<compile_context>
chip_gen: v6e
topology: v6e:2x2x1
jax: 0.10.0
libtpu: 0.0.40
codegen_flags: <defaults>
</compile_context>

<pallas_src>
import jax
import jax.numpy as jnp
from jax.experimental import pallas as pl
from jax.experimental.pallas import tpu as pltpu

NUM_AGENTS = 2
IN_FEATURES = 2 * NUM_AGENTS + 1   # 5
HIDDEN = 32
OUT_FEATURES = 1


def _round_up(n, m):
    return ((n + m - 1) // m) * m


def valuenet_kernel(xT_ref, w1_ref, b1_ref, w2_ref, b2_ref, o_ref):
    # xT_ref: (IN_FEATURES, TILE_B)  -- batch on lanes (lane-dense loads)
    # w1_ref: (HIDDEN, IN_FEATURES)  -- PyTorch (out, in) layout
    # b1_ref: (HIDDEN, 1)
    # w2_ref: (HIDDEN, 1)
    # b2_ref: (1, 1) scalar in SMEM
    # o_ref : (1, TILE_B)            -- lane-dense store
    xT = xT_ref[...]
    w1 = w1_ref[...]

    # fc1 as IN_FEATURES(=5) broadcast FMAs on the VPU:
    #   h[j, b] = b1[j] + sum_k w1[j, k] * x[b, k]
    h = b1_ref[...] + w1[:, 0:1] * xT[0:1, :]
    for k in range(1, IN_FEATURES):            # static unroll, K = 5
        h = h + w1[:, k:k + 1] * xT[k:k + 1, :]
    h = jnp.maximum(h, 0.0)                    # ReLU (VPU)

    # fc2: elementwise multiply + sublane reduce over the 32 hidden units.
    v = jnp.sum(h * w2_ref[...], axis=0, keepdims=True)   # (1, TILE_B)
    o_ref[...] = (v + b2_ref[0, 0]).astype(o_ref.dtype)


def value_net_forward(x, params, *, tile_b=8192):
    """x: (B, IN_FEATURES) float32 -> (B,) float32 (matches .squeeze(-1))."""
    w1, b1, w2, b2 = params
    B = x.shape[0]

    # Batch lives on the lane axis -> tile must be a multiple of 128.
    tile_b = min(tile_b, _round_up(B, 128))
    b_pad = _round_up(B, tile_b)
    grid = (b_pad // tile_b,)

    # Feature-major layout: one transpose in the wrapper keeps every in-kernel
    # load/store lane-dense ((B, 5)/(B, 1) layouts waste ~96% of each vreg and
    # force masked stores).
    xT = x.T                                   # (IN_FEATURES, B)
    if b_pad != B:
        xT = jnp.pad(xT, ((0, 0), (0, b_pad - B)))

    out = pl.pallas_call(
        valuenet_kernel,
        out_shape=jax.ShapeDtypeStruct((1, b_pad), jnp.float32),
        grid=grid,
        in_specs=[
            pl.BlockSpec((IN_FEATURES, tile_b), lambda i: (0, i)),   # xT tile
            pl.BlockSpec((HIDDEN, IN_FEATURES), lambda i: (0, 0)),   # w1
            pl.BlockSpec((HIDDEN, 1), lambda i: (0, 0)),             # b1
            pl.BlockSpec((HIDDEN, 1), lambda i: (0, 0)),             # w2 (col)
            pl.BlockSpec(memory_space=pltpu.MemorySpace.SMEM),       # b2 scalar
        ],
        out_specs=pl.BlockSpec((1, tile_b), lambda i: (0, i)),
        compiler_params=pltpu.CompilerParams(
            dimension_semantics=("parallel",),   # megacore-shard batch tiles
            vmem_limit_bytes=32 * 1024 * 1024,
        ),
    )(xT, w1, b1, w2, b2)
    return out[0, :B]


def init_params(key):
    """Deterministic init mirroring nn.Linear's U(-1/sqrt(fan_in), 1/sqrt(fan_in))."""
    k1, k2, k3, k4 = jax.random.split(key, 4)
    bound1 = 1.0 / jnp.sqrt(jnp.float32(IN_FEATURES))
    bound2 = 1.0 / jnp.sqrt(jnp.float32(HIDDEN))
    # w1 in PyTorch (out, in) layout; w2 stored as a (HIDDEN, 1) column.
    w1 = jax.random.uniform(k1, (HIDDEN, IN_FEATURES), jnp.float32, -bound1, bound1)
    b1 = jax.random.uniform(k2, (HIDDEN, 1), jnp.float32, -bound1, bound1)
    w2 = jax.random.uniform(k3, (HIDDEN, OUT_FEATURES), jnp.float32, -bound2, bound2)
    b2 = jax.random.uniform(k4, (1, OUT_FEATURES), jnp.float32, -bound2, bound2)
    return w1, b1, w2, b2


if __name__ == "__main__":
    key = jax.random.PRNGKey(0)
    kp, kx = jax.random.split(key)
    params = init_params(kp)
    w1, b1, w2, b2 = params

    def ref_forward(xx):
        h = jnp.maximum(xx @ w1.T + b1[:, 0], 0.0)
        return (h @ w2 + b2)[:, 0]

    # Small demo batch.
    batch = 8
    x = jax.random.normal(kx, (batch, IN_FEATURES), jnp.float32)
    out = jax.block_until_ready(value_net_forward(x, params))
    assert out.shape == (batch,)
    assert jnp.allclose(out, ref_forward(x), atol=1e-5, rtol=1e-5)

    # Exercise a multi-step grid + batch padding (B not a multiple of the tile).
    batch2 = 300
    x2 = jax.random.normal(jax.random.PRNGKey(1), (batch2, IN_FEATURES), jnp.float32)
    out2 = jax.block_until_ready(value_net_forward(x2, params, tile_b=128))
    assert out2.shape == (batch2,)
    assert jnp.allclose(out2, ref_forward(x2), atol=1e-5, rtol=1e-5)

    print("KERNEL_OK")
</pallas_src>

<mosaic_0001>
module attributes {stable_mosaic.version = 11 : i64} {
  func.func @valuenet_kernel(%arg0: i32, %arg1: memref<5x128xf32, #tpu.memory_space<vmem>>, %arg2: memref<32x5xf32, #tpu.memory_space<vmem>>, %arg3: memref<32x1xf32, #tpu.memory_space<vmem>>, %arg4: memref<32x1xf32, #tpu.memory_space<vmem>>, %arg5: memref<1x1xf32, #tpu.memory_space<smem>>, %arg6: memref<1x128xf32, #tpu.memory_space<vmem>>) attributes {dimension_semantics = [#tpu.dimension_semantics<parallel>], iteration_bounds = array<i64: 1>, scalar_prefetch = 0 : i64, scratch_operands = 0 : i64, tpu.core_type = #tpu.core_type<tc>, window_params = [{transform_indices = @transform_0, window_bounds = array<i64: 5, 128>}, {pipeline_mode = #tpu.pipeline_mode<synchronous>, transform_indices = @transform_1, window_bounds = array<i64: 32, 5>}, {pipeline_mode = #tpu.pipeline_mode<synchronous>, transform_indices = @transform_2, window_bounds = array<i64: 32, 1>}, {pipeline_mode = #tpu.pipeline_mode<synchronous>, transform_indices = @transform_3, window_bounds = array<i64: 32, 1>}, {transform_indices = @transform_4, window_bounds = array<i64: 1, 1>}, {transform_indices = @transform_5, window_bounds = array<i64: 1, 128>}]} {
    %c0 = arith.constant 0 : index
    %c0_0 = arith.constant 0 : index
    %0 = vector.load %arg1[%c0, %c0_0] : memref<5x128xf32, #tpu.memory_space<vmem>>, vector<5x128xf32>
    %c0_1 = arith.constant 0 : index
    %c0_2 = arith.constant 0 : index
    %1 = vector.load %arg2[%c0_1, %c0_2] : memref<32x5xf32, #tpu.memory_space<vmem>>, vector<32x5xf32>
    %c0_3 = arith.constant 0 : index
    %c0_4 = arith.constant 0 : index
    %2 = vector.load %arg3[%c0_3, %c0_4] : memref<32x1xf32, #tpu.memory_space<vmem>>, vector<32x1xf32>
    %3 = vector.extract_strided_slice %1 {offsets = [0, 0], sizes = [32, 1], strides = [1, 1]} : vector<32x5xf32> to vector<32x1xf32>
    %4 = vector.extract_strided_slice %0 {offsets = [0, 0], sizes = [1, 128], strides = [1, 1]} : vector<5x128xf32> to vector<1x128xf32>
    %5 = vector.broadcast %3 : vector<32x1xf32> to vector<32x128xf32>
    %6 = vector.broadcast %4 : vector<1x128xf32> to vector<32x128xf32>
    %7 = arith.mulf %5, %6 : vector<32x128xf32>
    %8 = vector.broadcast %2 : vector<32x1xf32> to vector<32x128xf32>
    %9 = arith.addf %8, %7 : vector<32x128xf32>
    %10 = vector.extract_strided_slice %1 {offsets = [0, 1], sizes = [32, 1], strides = [1, 1]} : vector<32x5xf32> to vector<32x1xf32>
    %11 = vector.extract_strided_slice %0 {offsets = [1, 0], sizes = [1, 128], strides = [1, 1]} : vector<5x128xf32> to vector<1x128xf32>
    %12 = vector.broadcast %10 : vector<32x1xf32> to vector<32x128xf32>
    %13 = vector.broadcast %11 : vector<1x128xf32> to vector<32x128xf32>
    %14 = arith.mulf %12, %13 : vector<32x128xf32>
    %15 = arith.addf %9, %14 : vector<32x128xf32>
    %16 = vector.extract_strided_slice %1 {offsets = [0, 2], sizes = [32, 1], strides = [1, 1]} : vector<32x5xf32> to vector<32x1xf32>
    %17 = vector.extract_strided_slice %0 {offsets = [2, 0], sizes = [1, 128], strides = [1, 1]} : vector<5x128xf32> to vector<1x128xf32>
    %18 = vector.broadcast %16 : vector<32x1xf32> to vector<32x128xf32>
    %19 = vector.broadcast %17 : vector<1x128xf32> to vector<32x128xf32>
    %20 = arith.mulf %18, %19 : vector<32x128xf32>
    %21 = arith.addf %15, %20 : vector<32x128xf32>
    %22 = vector.extract_strided_slice %1 {offsets = [0, 3], sizes = [32, 1], strides = [1, 1]} : vector<32x5xf32> to vector<32x1xf32>
    %23 = vector.extract_strided_slice %0 {offsets = [3, 0], sizes = [1, 128], strides = [1, 1]} : vector<5x128xf32> to vector<1x128xf32>
    %24 = vector.broadcast %22 : vector<32x1xf32> to vector<32x128xf32>
    %25 = vector.broadcast %23 : vector<1x128xf32> to vector<32x128xf32>
    %26 = arith.mulf %24, %25 : vector<32x128xf32>
    %27 = arith.addf %21, %26 : vector<32x128xf32>
    %28 = vector.extract_strided_slice %1 {offsets = [0, 4], sizes = [32, 1], strides = [1, 1]} : vector<32x5xf32> to vector<32x1xf32>
    %29 = vector.extract_strided_slice %0 {offsets = [4, 0], sizes = [1, 128], strides = [1, 1]} : vector<5x128xf32> to vector<1x128xf32>
    %30 = vector.broadcast %28 : vector<32x1xf32> to vector<32x128xf32>
    %31 = vector.broadcast %29 : vector<1x128xf32> to vector<32x128xf32>
    %32 = arith.mulf %30, %31 : vector<32x128xf32>
    %33 = arith.addf %27, %32 : vector<32x128xf32>
    %cst = arith.constant 0.000000e+00 : f32
    %34 = vector.broadcast %cst : f32 to vector<32x128xf32>
    %35 = arith.maximumf %33, %34 : vector<32x128xf32>
    %c0_5 = arith.constant 0 : index
    %c0_6 = arith.constant 0 : index
    %36 = vector.load %arg4[%c0_5, %c0_6] : memref<32x1xf32, #tpu.memory_space<vmem>>, vector<32x1xf32>
    %37 = vector.broadcast %36 : vector<32x1xf32> to vector<32x128xf32>
    %38 = arith.mulf %35, %37 : vector<32x128xf32>
    %cst_7 = arith.constant dense<0.000000e+00> : vector<128xf32>
    %39 = vector.multi_reduction <add>, %38, %cst_7 [0] : vector<32x128xf32> to vector<128xf32>
    %40 = vector.shape_cast %39 : vector<128xf32> to vector<1x128xf32>
    %c0_8 = arith.constant 0 : index
    %c0_9 = arith.constant 0 : index
    %41 = memref.load %arg5[%c0_8, %c0_9] : memref<1x1xf32, #tpu.memory_space<smem>>
    %42 = vector.broadcast %41 : f32 to vector<1x128xf32>
    %43 = arith.addf %40, %42 : vector<1x128xf32>
    %c0_10 = arith.constant 0 : index
    %c0_11 = arith.constant 0 : index
    %44 = vector.load %arg6[%c0_10, %c0_11] : memref<1x128xf32, #tpu.memory_space<vmem>>, vector<1x128xf32>
    tpu.vector_store %arg6[%c0_10, %c0_11], %43 {strides = array<i32>} : memref<1x128xf32, #tpu.memory_space<vmem>>, vector<1x128xf32>,
    return
  }
  func.func @transform_0(%arg0: i32) -> (i32, i32) {
    %c0_i32 = arith.constant 0 : i32
    %c0_i32_0 = arith.constant 0 : i32
    return %c0_i32, %arg0 : i32, i32
  }
  func.func @transform_1(%arg0: i32) -> (i32, i32) {
    %c0_i32 = arith.constant 0 : i32
    %c0_i32_0 = arith.constant 0 : i32
    %c0_i32_1 = arith.constant 0 : i32
    return %c0_i32, %c0_i32_0 : i32, i32
  }
  func.func @transform_2(%arg0: i32) -> (i32, i32) {
    %c0_i32 = arith.constant 0 : i32
    %c0_i32_0 = arith.constant 0 : i32
    %c0_i32_1 = arith.constant 0 : i32
    return %c0_i32, %c0_i32_0 : i32, i32
  }
  func.func @transform_3(%arg0: i32) -> (i32, i32) {
    %c0_i32 = arith.constant 0 : i32
    %c0_i32_0 = arith.constant 0 : i32
    %c0_i32_1 = arith.constant 0 : i32
    return %c0_i32, %c0_i32_0 : i32, i32
  }
  func.func @transform_4(%arg0: i32) -> (i32, i32) {
    %c0_i32 = arith.constant 0 : i32
    %c0_i32_0 = arith.constant 0 : i32
    %c0_i32_1 = arith.constant 0 : i32
    return %c0_i32, %c0_i32_0 : i32, i32
  }
  func.func @transform_5(%arg0: i32) -> (i32, i32) {
    %c0_i32 = arith.constant 0 : i32
    %c0_i32_0 = arith.constant 0 : i32
    return %c0_i32, %arg0 : i32, i32
  }
}

</mosaic_0001>

<llo_original>
// kernel: tpu_custom_call.1
$region0: #{tpu_custom_call.1}
  #allocation0 [shape = 'u32[]', space=smem, size = 0x4, offset = 0x4, fixed_abs, tag = 'smem constant byte address 0x4 - core index']
  #allocation1 [shape = 'u32[144,128]{1,0:T(1,128)}', space=vmem, size = 0x12000, scoped, tag = 'internal scratch']
  #allocation2 [shape = 'f32[1,1]{1,0:T(1,128)S(6)}', space=smem, size = 0x200, scoped, tag = 'scoped memory for tpu_custom_call.1']
  %s0 = inlined_call_operand.vmem [shape: f32[5,128], index: 0, kind: input, shape index: {}]
  %s1 = inlined_call_operand.vmem [shape: f32[32,5], index: 1, kind: input, shape index: {}]
  %s2 = inlined_call_operand.vmem [shape: f32[32,1], index: 2, kind: input, shape index: {}]
  %s3 = inlined_call_operand.vmem [shape: f32[32,1], index: 3, kind: input, shape index: {}]
  %s4 = inlined_call_operand.<no memory space> [shape: f32[1,1], index: 4, kind: input, shape index: {}]
  %s5 = inlined_call_operand.hbm [shape: f32[1,128], index: 5, kind: output, shape index: {}]
  %s6 = sld [smem:[#allocation0]]
  $region30: #{tpu_custom_call.1} parent=0
    _
  %s8 = ssub.s32 1, %s6
  %s9 = scalar_select 0, %s8, %s6
  %10 = sst [smem:[#allocation2]] %s4
  $region1: #{tpu_custom_call.1} parent=0
    #allocation3 [shape = 'u8[512]{0}', space=vmem, size = 0x400, scoped, tag = 'output window, operand 0, single buffered']
    #allocation4 [shape = 's32[1]{0}', space=sflag, size = 0x4, scoped, tag = 'scoped memory for tpu_custom_call.1']
    %11 = vsyncpa [#allocation4], 0
    // Predicated region
    $region2: #{tpu_custom_call.1} parent=1 // pred_check
      _
    $region3: #{tpu_custom_call.1} parent=1 // pred_check_branch
      %13 = sbr.rel (0) target = $region5
    $region4: #{tpu_custom_call.1} parent=1 // pred_region
      _
    $region5: #{tpu_custom_call.1} parent=1 // pred_fallthru
      _
    // Predicated region
    $region6: #{tpu_custom_call.1} parent=1 // pred_check
      _
    $region7: #{tpu_custom_call.1} parent=1 // pred_check_branch
      %15 = sbr.rel (0) target = $region9
    $region8: #{tpu_custom_call.1} parent=1 // pred_region
      _
    $region9: #{tpu_custom_call.1} parent=1 // pred_fallthru
      _
    // Predicated region
    $region10: #{tpu_custom_call.1} parent=1 // pred_check
      _
    $region11: #{tpu_custom_call.1} parent=1 // pred_check_branch
      %17 = sbr.rel (0) target = $region13
    $region12: #{tpu_custom_call.1} parent=1 // pred_region
      _
    $region13: #{tpu_custom_call.1} parent=1 // pred_fallthru
      _
    // Predicated region
    $region14: #{tpu_custom_call.1} parent=1 // pred_check
      _
    $region15: #{tpu_custom_call.1} parent=1 // pred_check_branch
      %19 = sbr.rel (0) target = $region17
    $region16: #{tpu_custom_call.1} parent=1 // pred_region
      _
    $region17: #{tpu_custom_call.1} parent=1 // pred_fallthru
      _
    // Predicated region
    $region18: #{tpu_custom_call.1} parent=1 // pred_check
      _
    $region19: #{tpu_custom_call.1} parent=1 // pred_check_branch
      %21 = sbr.rel (0) target = $region21
    $region20: #{tpu_custom_call.1} parent=1 // pred_region
      _
    $region21: #{tpu_custom_call.1} parent=1 // pred_fallthru
      _
    %v22 = vld [vmem:[%s0] sm:$0x1f]
    %v23 = vld [vmem:[%s1] sm:$0xff]
    %v24 = vld [vmem:[%s1 + $0x8] sm:$0xff]
    %v25 = vld [vmem:[%s1 + $0x10] sm:$0xff]
    %v26 = vld [vmem:[%s1 + $0x18] sm:$0xff]
    %v27 = vld [vmem:[%s2] sm:$0xff]
    %v28 = vld [vmem:[%s2 + $0x8] sm:$0xff]
    %v29 = vld [vmem:[%s2 + $0x10] sm:$0xff]
    %v30 = vld [vmem:[%s2 + $0x18] sm:$0xff]
    %32 = vset.pattern.permute.xlu0 0
    %33 = vperm.xlu0 %32, %v23
    %v34 = vpop.permute.xlu0 %33
    %37 = vset.pattern.permute.xlu0 0
    %38 = vperm.xlu0 %37, %v24
    %v39 = vpop.permute.xlu0 %38
    %42 = vset.pattern.permute.xlu0 0
    %43 = vperm.xlu0 %42, %v25
    %v44 = vpop.permute.xlu0 %43
    %47 = vset.pattern.permute.xlu0 0
    %48 = vperm.xlu0 %47, %v26
    %v49 = vpop.permute.xlu0 %48
    %v51 = vlaneseq
    %v52 = vshrl.u32 %v51, 7
    %v53 = vsub.s32 0, %v52
    %v54 = vrot.slane %v22, %v53
    %v55 = vmul.f32 %v34, %v54
    %v56 = vmul.f32 %v39, %v54
    %v57 = vmul.f32 %v44, %v54
    %v58 = vmul.f32 %v49, %v54
    %60 = vset.pattern.permute.xlu0 0
    %61 = vperm.xlu0 %60, %v27
    %v62 = vpop.permute.xlu0 %61
    %65 = vset.pattern.permute.xlu0 0
    %66 = vperm.xlu0 %65, %v28
    %v67 = vpop.permute.xlu0 %66
    %70 = vset.pattern.permute.xlu0 0
    %71 = vperm.xlu0 %70, %v29
    %v72 = vpop.permute.xlu0 %71
    %75 = vset.pattern.permute.xlu0 0
    %76 = vperm.xlu0 %75, %v30
    %v77 = vpop.permute.xlu0 %76
    %v79 = vadd.f32 %v62, %v55
    %v80 = vadd.f32 %v67, %v56
    %v81 = vadd.f32 %v72, %v57
    %v82 = vadd.f32 %v77, %v58
    %83 = vset.pattern.permute.xlu0 1
    %84 = vperm.xlu0 %83, %v23
    %v85 = vpop.permute.xlu0 %84
    %87 = vset.pattern.permute.xlu0 1
    %88 = vperm.xlu0 %87, %v24
    %v89 = vpop.permute.xlu0 %88
    %91 = vset.pattern.permute.xlu0 1
    %92 = vperm.xlu0 %91, %v25
    %v93 = vpop.permute.xlu0 %92
    %95 = vset.pattern.permute.xlu0 1
    %96 = vperm.xlu0 %95, %v26
    %v97 = vpop.permute.xlu0 %96
    %v99 = vlaneseq
    %v100 = vshrl.u32 %v99, 7
    %v101 = vsub.s32 1, %v100
    %v102 = vrot.slane %v22, %v101
    %v103 = vmul.f32 %v85, %v102
    %v104 = vmul.f32 %v89, %v102
    %v105 = vmul.f32 %v93, %v102
    %v106 = vmul.f32 %v97, %v102
    %v107 = vadd.f32 %v79, %v103
    %v108 = vadd.f32 %v80, %v104
    %v109 = vadd.f32 %v81, %v105
    %v110 = vadd.f32 %v82, %v106
    %111 = vset.pattern.permute.xlu0 2
    %112 = vperm.xlu0 %111, %v23
    %v113 = vpop.permute.xlu0 %112
    %115 = vset.pattern.permute.xlu0 2
    %116 = vperm.xlu0 %115, %v24
    %v117 = vpop.permute.xlu0 %116
    %119 = vset.pattern.permute.xlu0 2
    %120 = vperm.xlu0 %119, %v25
    %v121 = vpop.permute.xlu0 %120
    %123 = vset.pattern.permute.xlu0 2
    %124 = vperm.xlu0 %123, %v26
    %v125 = vpop.permute.xlu0 %124
    %v127 = vlaneseq
    %v128 = vshrl.u32 %v127, 7
    %v129 = vsub.s32 2, %v128
    %v130 = vrot.slane %v22, %v129
    %v131 = vmul.f32 %v113, %v130
    %v132 = vmul.f32 %v117, %v130
    %v133 = vmul.f32 %v121, %v130
    %v134 = vmul.f32 %v125, %v130
    %v135 = vadd.f32 %v107, %v131
    %v136 = vadd.f32 %v108, %v132
    %v137 = vadd.f32 %v109, %v133
    %v138 = vadd.f32 %v110, %v134
    %139 = vset.pattern.permute.xlu0 3
    %140 = vperm.xlu0 %139, %v23
    %v141 = vpop.permute.xlu0 %140
    %143 = vset.pattern.permute.xlu0 3
    %144 = vperm.xlu0 %143, %v24
    %v145 = vpop.permute.xlu0 %144
    %147 = vset.pattern.permute.xlu0 3
    %148 = vperm.xlu0 %147, %v25
    %v149 = vpop.permute.xlu0 %148
    %151 = vset.pattern.permute.xlu0 3
    %152 = vperm.xlu0 %151, %v26
    %v153 = vpop.permute.xlu0 %152
    %v155 = vlaneseq
    %v156 = vshrl.u32 %v155, 7
    %v157 = vsub.s32 3, %v156
    %v158 = vrot.slane %v22, %v157
    %v159 = vmul.f32 %v141, %v158
    %v160 = vmul.f32 %v145, %v158
    %v161 = vmul.f32 %v149, %v158
    %v162 = vmul.f32 %v153, %v158
    %v163 = vadd.f32 %v135, %v159
    %v164 = vadd.f32 %v136, %v160
    %v165 = vadd.f32 %v137, %v161
    %v166 = vadd.f32 %v138, %v162
    %167 = vset.pattern.permute.xlu0 4
    %168 = vperm.xlu0 %167, %v23
    %v169 = vpop.permute.xlu0 %168
    %171 = vset.pattern.permute.xlu0 4
    %172 = vperm.xlu0 %171, %v24
    %v173 = vpop.permute.xlu0 %172
    %175 = vset.pattern.permute.xlu0 4
    %176 = vperm.xlu0 %175, %v25
    %v177 = vpop.permute.xlu0 %176
    %179 = vset.pattern.permute.xlu0 4
    %180 = vperm.xlu0 %179, %v26
    %v181 = vpop.permute.xlu0 %180
    %v183 = vlaneseq
    %v184 = vshrl.u32 %v183, 7
    %v185 = vsub.s32 4, %v184
    %v186 = vrot.slane %v22, %v185
    %v187 = vmul.f32 %v169, %v186
    %v188 = vmul.f32 %v173, %v186
    %v189 = vmul.f32 %v177, %v186
    %v190 = vmul.f32 %v181, %v186
    %v191 = vadd.f32 %v163, %v187
    %v192 = vadd.f32 %v164, %v188
    %v193 = vadd.f32 %v165, %v189
    %v194 = vadd.f32 %v166, %v190
    %v195 = vmax.f32 %v191, 0.0
    %v196 = vmax.f32 %v192, 0.0
    %v197 = vmax.f32 %v193, 0.0
    %v198 = vmax.f32 %v194, 0.0
    %v199 = vld [vmem:[%s3] sm:$0xff]
    %v200 = vld [vmem:[%s3 + $0x8] sm:$0xff]
    %v201 = vld [vmem:[%s3 + $0x10] sm:$0xff]
    %v202 = vld [vmem:[%s3 + $0x18] sm:$0xff]
    %204 = vset.pattern.permute.xlu0 0
    %205 = vperm.xlu0 %204, %v199
    %v206 = vpop.permute.xlu0 %205
    %209 = vset.pattern.permute.xlu0 0
    %210 = vperm.xlu0 %209, %v200
    %v211 = vpop.permute.xlu0 %210
    %214 = vset.pattern.permute.xlu0 0
    %215 = vperm.xlu0 %214, %v201
    %v216 = vpop.permute.xlu0 %215
    %219 = vset.pattern.permute.xlu0 0
    %220 = vperm.xlu0 %219, %v202
    %v221 = vpop.permute.xlu0 %220
    %v223 = vmul.f32 %v195, %v206
    %v224 = vmul.f32 %v196, %v211
    %v225 = vmul.f32 %v197, %v216
    %v226 = vmul.f32 %v198, %v221
    %v227 = vadd.f32 %v223, %v224
    %v228 = vadd.f32 %v227, %v225
    %v229 = vadd.f32 %v228, %v226
    %v230 = vrot.slane %v229, 4
    %v231 = vadd.f32 %v229, %v230
    %v232 = vrot.slane %v231, 2
    %v233 = vadd.f32 %v231, %v232
    %v234 = vrot.slane %v233, 1
    %v235 = vadd.f32 %v233, %v234
    %s236 = sld [smem:[#allocation2]]
    %v237 = vstv %s236
    %v238 = vadd.f32 %v235, %v237
    %239 = vst [vmem:[#allocation3] sm:$0x1] %v238
    // Predicated region
    $region22: #{tpu_custom_call.1} parent=1 // pred_check
      _
    $region23: #{tpu_custom_call.1} parent=1 // pred_check_branch
      %241 = sbr.rel (0) target = $region25
    $region24: #{tpu_custom_call.1} parent=1 // pred_region
      %s243 = ssub.s32 16, 16
      %244 = vsyncadd [#allocation4], %s243
      %s246 = sshll.u32 [#allocation3], 4
      %s247 = int_to_ptr.vmem [resolvable:$true] %s246
      %249 = dma.vmem_to_hbm [thread:$0]  %s247, 16, %s5, [#allocation4]
    $region25: #{tpu_custom_call.1} parent=1 // pred_fallthru
      _
    // Predicated region
    $region26: #{tpu_custom_call.1} parent=1 // pred_check
      _
    $region27: #{tpu_custom_call.1} parent=1 // pred_check_branch
      %251 = sbr.rel (0) target = $region29
    $region28: #{tpu_custom_call.1} parent=1 // pred_region
      %252 = dma.done [#allocation4], 16
    $region29: #{tpu_custom_call.1} parent=1 // pred_fallthru
      _
    %253 = vsyncpa [#allocation4], 1

</llo_original>
